<compile_context>
chip_gen: v7x
topology: tpu7x:2x2x1
jax: 0.10.0
libtpu: 0.0.40
codegen_flags: <defaults>
</compile_context>

<pallas_src>
import jax
import jax.numpy as jnp
from jax.experimental import pallas as pl
from jax.experimental.pallas import tpu as pltpu


def _round_up(n, m):
    return ((n + m - 1) // m) * m


def fused_affine_kernel(wb_ref, xt_ref, o_ref):
    # wb_ref: (K+1,) f32 in SMEM   -- fused weights wb[0..K-1], bias wb[K]
    # xt_ref: (K, TB)     in VMEM  -- batch on the lane axis
    # o_ref : (1, TB)     in VMEM  -- lane-dense output (real data only)
    x = xt_ref[...].astype(jnp.float32)          # (K, TB)
    K = x.shape[0]                               # static (block dim)

    # Unrolled per-sublane FMA: pure VPU work on 128 real batch elems / vreg.
    acc = x[0:1, :] * wb_ref[0]                  # (1, TB)
    for k in range(1, K):
        acc = acc + x[k:k + 1, :] * wb_ref[k]
    o_ref[...] = (acc + wb_ref[K]).astype(o_ref.dtype)


def model_forward(x, w1, b1, w2, b2, *, max_lanes_per_tile=64 * 1024,
                  use_pallas=None):
    """Equivalent of Model.forward: (x @ w1.T + b1) @ w2.T + b2 -> (B, 1)."""
    B, K = x.shape
    f32 = jnp.float32

    # Exact algebraic fusion of the two affine layers (constant-folds under
    # jit; done once in the wrapper, never per-tile).
    w_eff = (w2.astype(f32) @ w1.astype(f32)).reshape(-1)                 # (K,)
    b_eff = (w2.astype(f32) @ b1.reshape(-1).astype(f32)
             + b2.reshape(-1).astype(f32))                                # (1,)
    wb = jnp.concatenate([w_eff, b_eff])                                  # (K+1,)

    if use_pallas is None:
        use_pallas = B >= 4096
    if not use_pallas:
        # Tiny/medium batch: launch + pipeline overhead dwarfs the math; let
        # XLA fuse the single affine into neighboring ops.
        return (x.astype(f32) @ w_eff[:, None] + b_eff).astype(x.dtype)

    # Batch on the lane axis -> contiguous, lane-dense DMAs both directions.
    x_t = x.T                                                             # (K, B)

    # Lane tile: multiple of 128, capped for VMEM; ensure >=2 grid steps for
    # v7x's two TensorCores when there is enough work to split.
    tb = min(max_lanes_per_tile, _round_up(B, 128))
    if B > 256 and pl.cdiv(B, tb) < 2:
        tb = _round_up(pl.cdiv(B, 2), 128)
    grid = (pl.cdiv(B, tb),)   # no jnp.pad; Pallas masks the partial tail

    out = pl.pallas_call(
        fused_affine_kernel,
        out_shape=jax.ShapeDtypeStruct((1, B), x.dtype),
        grid=grid,
        in_specs=[
            pl.BlockSpec(memory_space=pltpu.MemorySpace.SMEM),   # wb (K+1,)
            pl.BlockSpec((K, tb), lambda i: (0, i)),             # x_t tile
        ],
        out_specs=pl.BlockSpec((1, tb), lambda i: (0, i)),
        compiler_params=pltpu.CompilerParams(
            dimension_semantics=("parallel",),
        ),
    )(wb, x_t)

    # (1, B) -> (B, 1): pure layout plumbing on real data only.
    return out.reshape(B, 1)


if __name__ == "__main__":
    input_size = 5
    batch = 8

    key = jax.random.PRNGKey(0)
    kx, kw1, kb1, kw2, kb2 = jax.random.split(key, 5)

    # Deterministic synthetic parameters (PyTorch nn.Linear shapes).
    x = jax.random.normal(kx, (batch, input_size), dtype=jnp.float32)
    w1 = jax.random.normal(kw1, (4, input_size), dtype=jnp.float32) * 0.1
    b1 = jax.random.normal(kb1, (4,), dtype=jnp.float32) * 0.1
    w2 = jax.random.normal(kw2, (1, 4), dtype=jnp.float32) * 0.1
    b2 = jax.random.normal(kb2, (1,), dtype=jnp.float32) * 0.1

    # Plain-JAX reference (same math as the PyTorch forward).
    ref = (x @ w1.T + b1) @ w2.T + b2

    # Force the Pallas path at the module's native tiny batch.
    out = model_forward(x, w1, b1, w2, b2, use_pallas=True)
    jax.block_until_ready(out)
    assert out.shape == (batch, 1)
    assert jnp.allclose(out, ref, atol=1e-5, rtol=1e-5)

    # Auto-dispatch path (plain JAX at this batch) must agree too.
    out_auto = model_forward(x, w1, b1, w2, b2)
    assert jnp.allclose(out_auto, ref, atol=1e-5, rtol=1e-5)

    # Multi-tile path: grid of 4 lane-tiles with a masked partial tail.
    batch2 = 389
    x2 = jax.random.normal(kx, (batch2, input_size), dtype=jnp.float32)
    ref2 = (x2 @ w1.T + b1) @ w2.T + b2
    out2 = model_forward(x2, w1, b1, w2, b2,
                         max_lanes_per_tile=128, use_pallas=True)
    jax.block_until_ready(out2)
    assert out2.shape == (batch2, 1)
    assert jnp.allclose(out2, ref2, atol=1e-5, rtol=1e-5)

    print("KERNEL_OK")
</pallas_src>

<mosaic_0001>
module attributes {stable_mosaic.version = 11 : i64} {
  func.func @fused_affine_kernel(%arg0: i32, %arg1: memref<6xf32, #tpu.memory_space<smem>>, %arg2: memref<5x128xf32, #tpu.memory_space<vmem>>, %arg3: memref<1x128xf32, #tpu.memory_space<vmem>>) attributes {dimension_semantics = [#tpu.dimension_semantics<parallel>], iteration_bounds = array<i64: 1>, scalar_prefetch = 0 : i64, scratch_operands = 0 : i64, tpu.core_type = #tpu.core_type<tc>, window_params = [{transform_indices = @transform_0, window_bounds = array<i64: 6>}, {transform_indices = @transform_1, window_bounds = array<i64: 5, 128>}, {transform_indices = @transform_2, window_bounds = array<i64: 1, 128>}]} {
    %c0 = arith.constant 0 : index
    %c0_0 = arith.constant 0 : index
    %0 = vector.load %arg2[%c0, %c0_0] : memref<5x128xf32, #tpu.memory_space<vmem>>, vector<5x128xf32>
    %1 = vector.extract_strided_slice %0 {offsets = [0, 0], sizes = [1, 128], strides = [1, 1]} : vector<5x128xf32> to vector<1x128xf32>
    %c0_1 = arith.constant 0 : index
    %2 = memref.load %arg1[%c0_1] : memref<6xf32, #tpu.memory_space<smem>>
    %3 = vector.broadcast %2 : f32 to vector<1x128xf32>
    %4 = arith.mulf %1, %3 : vector<1x128xf32>
    %5 = vector.extract_strided_slice %0 {offsets = [1, 0], sizes = [1, 128], strides = [1, 1]} : vector<5x128xf32> to vector<1x128xf32>
    %c1 = arith.constant 1 : index
    %6 = memref.load %arg1[%c1] : memref<6xf32, #tpu.memory_space<smem>>
    %7 = vector.broadcast %6 : f32 to vector<1x128xf32>
    %8 = arith.mulf %5, %7 : vector<1x128xf32>
    %9 = arith.addf %4, %8 : vector<1x128xf32>
    %10 = vector.extract_strided_slice %0 {offsets = [2, 0], sizes = [1, 128], strides = [1, 1]} : vector<5x128xf32> to vector<1x128xf32>
    %c2 = arith.constant 2 : index
    %11 = memref.load %arg1[%c2] : memref<6xf32, #tpu.memory_space<smem>>
    %12 = vector.broadcast %11 : f32 to vector<1x128xf32>
    %13 = arith.mulf %10, %12 : vector<1x128xf32>
    %14 = arith.addf %9, %13 : vector<1x128xf32>
    %15 = vector.extract_strided_slice %0 {offsets = [3, 0], sizes = [1, 128], strides = [1, 1]} : vector<5x128xf32> to vector<1x128xf32>
    %c3 = arith.constant 3 : index
    %16 = memref.load %arg1[%c3] : memref<6xf32, #tpu.memory_space<smem>>
    %17 = vector.broadcast %16 : f32 to vector<1x128xf32>
    %18 = arith.mulf %15, %17 : vector<1x128xf32>
    %19 = arith.addf %14, %18 : vector<1x128xf32>
    %20 = vector.extract_strided_slice %0 {offsets = [4, 0], sizes = [1, 128], strides = [1, 1]} : vector<5x128xf32> to vector<1x128xf32>
    %c4 = arith.constant 4 : index
    %21 = memref.load %arg1[%c4] : memref<6xf32, #tpu.memory_space<smem>>
    %22 = vector.broadcast %21 : f32 to vector<1x128xf32>
    %23 = arith.mulf %20, %22 : vector<1x128xf32>
    %24 = arith.addf %19, %23 : vector<1x128xf32>
    %c5 = arith.constant 5 : index
    %25 = memref.load %arg1[%c5] : memref<6xf32, #tpu.memory_space<smem>>
    %26 = vector.broadcast %25 : f32 to vector<1x128xf32>
    %27 = arith.addf %24, %26 : vector<1x128xf32>
    %c0_2 = arith.constant 0 : index
    %c0_3 = arith.constant 0 : index
    %28 = vector.load %arg3[%c0_2, %c0_3] : memref<1x128xf32, #tpu.memory_space<vmem>>, vector<1x128xf32>
    tpu.vector_store %arg3[%c0_2, %c0_3], %27 {strides = array<i32>} : memref<1x128xf32, #tpu.memory_space<vmem>>, vector<1x128xf32>,
    return
  }
  func.func @transform_0(%arg0: i32) -> i32 {
    %c0_i32 = arith.constant 0 : i32
    %c0_i32_0 = arith.constant 0 : i32
    return %c0_i32 : i32
  }
  func.func @transform_1(%arg0: i32) -> (i32, i32) {
    %c0_i32 = arith.constant 0 : i32
    %c0_i32_0 = arith.constant 0 : i32
    return %c0_i32, %arg0 : i32, i32
  }
  func.func @transform_2(%arg0: i32) -> (i32, i32) {
    %c0_i32 = arith.constant 0 : i32
    %c0_i32_0 = arith.constant 0 : i32
    return %c0_i32, %arg0 : i32, i32
  }
}

</mosaic_0001>

<llo_original>
// kernel: tpu_custom_call.1
$region0: #{tpu_custom_call.1}
  #allocation0 [shape = 'u32[]', space=smem, size = 0x4, offset = 0x4, fixed_abs, tag = 'smem constant byte address 0x4 - core index']
  #allocation1 [shape = 'u32[144,128]{1,0:T(1,128)}', space=vmem, size = 0x12000, scoped, tag = 'internal scratch']
  %s0 = inlined_call_operand.hbm [shape: f32[6], index: 0, kind: input, shape index: {}]
  %s1 = inlined_call_operand.hbm [shape: f32[5,8], index: 1, kind: input, shape index: {}]
  %s2 = inlined_call_operand.hbm [shape: f32[1,8], index: 2, kind: output, shape index: {}]
  %s3 = sld [smem:[#allocation0]]
  $region26: #{tpu_custom_call.1} parent=0
    _
  %s5 = ssub.s32 1, %s3
  %s6 = scalar_select 0, %s5, %s3
  $region1: #{tpu_custom_call.1} parent=0
    #allocation2 [shape = 'u8[512]{0}', space=smem, size = 0x200, scoped, tag = 'input window, operand 0, single buffered']
    #allocation3 [shape = 's32[1]{0}', space=sflag, size = 0x4, scoped, tag = 'scoped memory for tpu_custom_call.1']
    #allocation4 [shape = 's32[1]{0}', space=sflag, size = 0x4, scoped, tag = 'scoped memory for tpu_custom_call.1']
    #allocation5 [shape = 's32[1]{0}', space=sflag, size = 0x4, scoped, tag = 'scoped memory for tpu_custom_call.1']
    #allocation6 [shape = 'u8[4096]{0}', space=vmem, size = 0x1000, scoped, tag = 'input window, operand 1, single buffered']
    #allocation7 [shape = 'u8[512]{0}', space=vmem, size = 0x400, scoped, tag = 'output window, operand 0, single buffered']
    %7 = vsyncpa [#allocation5], 0
    %8 = vsyncpa [#allocation3], 0
    %9 = vsyncpa [#allocation4], 0
    // Predicated region
    $region2: #{tpu_custom_call.1} parent=1 // pred_check
      _
    $region3: #{tpu_custom_call.1} parent=1 // pred_check_branch
      %11 = sbr.rel (0) target = $region5
    $region4: #{tpu_custom_call.1} parent=1 // pred_region
      %s13 = ssub.s32 16, 16
      %14 = vsyncadd [#allocation5], %s13
      %17 = dma.hbm_to_smem %s0, 16, [#allocation2], [#allocation5]
    $region5: #{tpu_custom_call.1} parent=1 // pred_fallthru
      _
    // Predicated region
    $region6: #{tpu_custom_call.1} parent=1 // pred_check
      _
    $region7: #{tpu_custom_call.1} parent=1 // pred_check_branch
      %19 = sbr.rel (0) target = $region9
    $region8: #{tpu_custom_call.1} parent=1 // pred_region
      %s21 = ssub.s32 128, 128
      %22 = vsyncadd [#allocation3], %s21
      %s24 = sshll.u32 [#allocation6], 4
      %s25 = int_to_ptr.vmem [resolvable:$true] %s24
      %27 = dma.hbm_to_vmem [thread:$0]  %s1, 128, %s25, [#allocation3]
    $region9: #{tpu_custom_call.1} parent=1 // pred_fallthru
      _
    // Predicated region
    $region10: #{tpu_custom_call.1} parent=1 // pred_check
      _
    $region11: #{tpu_custom_call.1} parent=1 // pred_check_branch
      %29 = sbr.rel (0) target = $region13
    $region12: #{tpu_custom_call.1} parent=1 // pred_region
      %30 = dma.done [#allocation5], 16
    $region13: #{tpu_custom_call.1} parent=1 // pred_fallthru
      _
    // Predicated region
    $region14: #{tpu_custom_call.1} parent=1 // pred_check
      _
    $region15: #{tpu_custom_call.1} parent=1 // pred_check_branch
      %32 = sbr.rel (0) target = $region17
    $region16: #{tpu_custom_call.1} parent=1 // pred_region
      %33 = dma.done [#allocation3], 128
    $region17: #{tpu_custom_call.1} parent=1 // pred_fallthru
      _
    %34 = sfence
    %v35 = vld [vmem:[#allocation6] sm:$0x1f]
    %s36 = sld [smem:[#allocation2]]
    %v37 = vstv %s36
    %v38 = vmul.f32 %v35, %v37
    %s39 = sld [smem:[#allocation2 + $0x1]]
    %v40 = vstv %s39
    %v41 = vmul.f32 %v35, %v40
    %v43 = vrot.slane %v41, 1
    %v45 = vadd.f32 %v38, %v43
    %s46 = sld [smem:[#allocation2 + $0x2]]
    %v47 = vstv %s46
    %v48 = vmul.f32 %v35, %v47
    %v50 = vrot.slane %v48, 2
    %v52 = vadd.f32 %v45, %v50
    %s53 = sld [smem:[#allocation2 + $0x3]]
    %v54 = vstv %s53
    %v55 = vmul.f32 %v35, %v54
    %v57 = vrot.slane %v55, 3
    %v59 = vadd.f32 %v52, %v57
    %s60 = sld [smem:[#allocation2 + $0x4]]
    %v61 = vstv %s60
    %v62 = vmul.f32 %v35, %v61
    %v64 = vrot.slane %v62, 4
    %v66 = vadd.f32 %v59, %v64
    %s67 = sld [smem:[#allocation2 + $0x5]]
    %v68 = vstv %s67
    %v69 = vadd.f32 %v66, %v68
    %70 = vst [vmem:[#allocation7] sm:$0x1] %v69
    // Predicated region
    $region18: #{tpu_custom_call.1} parent=1 // pred_check
      _
    $region19: #{tpu_custom_call.1} parent=1 // pred_check_branch
      %72 = sbr.rel (0) target = $region21
    $region20: #{tpu_custom_call.1} parent=1 // pred_region
      %s74 = ssub.s32 16, 16
      %75 = vsyncadd [#allocation4], %s74
      %s77 = sshll.u32 [#allocation7], 4
      %s78 = int_to_ptr.vmem [resolvable:$true] %s77
      %80 = dma.vmem_to_hbm [thread:$0]  %s78, 16, %s2, [#allocation4]
    $region21: #{tpu_custom_call.1} parent=1 // pred_fallthru
      _
    // Predicated region
    $region22: #{tpu_custom_call.1} parent=1 // pred_check
      _
    $region23: #{tpu_custom_call.1} parent=1 // pred_check_branch
      %82 = sbr.rel (0) target = $region25
    $region24: #{tpu_custom_call.1} parent=1 // pred_region
      %83 = dma.done [#allocation4], 16
    $region25: #{tpu_custom_call.1} parent=1 // pred_fallthru
      _
    %84 = vsyncpa [#allocation3], 1
    %85 = vsyncpa [#allocation4], 1
    %86 = vsyncpa [#allocation5], 1

</llo_original>
